<compile_context>
chip_gen: v7x
topology: tpu7x:2x2x1
jax: 0.10.0
libtpu: 0.0.40
codegen_flags: <defaults>
</compile_context>

<pallas_src>
import jax
import jax.numpy as jnp
from jax.experimental import pallas as pl
from jax.experimental.pallas import tpu as pltpu

EMB_DIM = 512
ENC_H = 256
LAT_DIM = 128
N_TOK = 900
N_VOCAB = 11
VOCAB_PAD = 16                       # pad vocab rows to a multiple of 8
FUSE_IN = 2 * LAT_DIM * N_TOK        # 230400
FUSE_H = 128
BN_EPS = 1e-5
LEAKY_SLOPE = 0.01


def _full_spec(a):
    """BlockSpec covering the whole (small, resident) array."""
    n = a.ndim
    return pl.BlockSpec(a.shape, lambda i, n=n: (0,) * n)


# ---------------- kernel 1: frozen encoder -> per-vocab (mu, sigma) tables ----
def _vocab_table_kernel(emb_ref, w1_ref, b1_ref, w2_ref, b2_ref,
                        wmu_ref, bmu_ref, wsg_ref, bsg_ref,
                        mu_ref, sg_ref):
    x = emb_ref[...]                                                # (16, 512)
    h1 = jnp.dot(x, w1_ref[...], preferred_element_type=jnp.float32) + b1_ref[...]
    h1 = jnp.maximum(h1, 0.0)                                       # ReLU
    h2 = jnp.dot(h1, w2_ref[...], preferred_element_type=jnp.float32) + b2_ref[...]
    h2 = jnp.maximum(h2, 0.0)                                       # ReLU
    mu_ref[...] = jnp.dot(h2, wmu_ref[...], preferred_element_type=jnp.float32) + bmu_ref[...]
    sg_ref[...] = jnp.dot(h2, wsg_ref[...], preferred_element_type=jnp.float32) + bsg_ref[...]


def vocab_tables(emb_pad, p):
    """emb_pad: (VOCAB_PAD, 512) -> mu/sigma tables, each (VOCAB_PAD, 128)."""
    out_shape = (jax.ShapeDtypeStruct((VOCAB_PAD, LAT_DIM), jnp.float32),
                 jax.ShapeDtypeStruct((VOCAB_PAD, LAT_DIM), jnp.float32))
    return pl.pallas_call(
        _vocab_table_kernel,
        out_shape=out_shape,
        grid=(1,),
        in_specs=[_full_spec(emb_pad),
                  _full_spec(p["enc_w1"]), _full_spec(p["enc_b1"]),
                  _full_spec(p["enc_w2"]), _full_spec(p["enc_b2"]),
                  _full_spec(p["mu_w"]), _full_spec(p["mu_b"]),
                  _full_spec(p["sg_w"]), _full_spec(p["sg_b"])],
        out_specs=(pl.BlockSpec((VOCAB_PAD, LAT_DIM), lambda i: (0, 0)),
                   pl.BlockSpec((VOCAB_PAD, LAT_DIM), lambda i: (0, 0))),
    )(emb_pad, p["enc_w1"], p["enc_b1"], p["enc_w2"], p["enc_b2"],
      p["mu_w"], p["mu_b"], p["sg_w"], p["sg_b"])


# ---------------- kernel 2: reparameterization, bf16 fused-layout output ------
def _reparam_kernel(mu_ref, sg_ref, eps_ref, lat_ref):
    lat = mu_ref[...] + jnp.exp(0.5 * sg_ref[...]) * eps_ref[...]
    lat_ref[...] = lat.astype(lat_ref.dtype)


def reparameterize(mu, sg, eps, tm=1800):
    """mu/sg/eps: (N, 128) f32 -> latent (N, 128) bf16; N = 1800*B rows."""
    N = mu.shape[0]
    assert N % tm == 0 and tm % 8 == 0, (N, tm)
    spec = pl.BlockSpec((tm, LAT_DIM), lambda i: (i, 0))
    return pl.pallas_call(
        _reparam_kernel,
        out_shape=jax.ShapeDtypeStruct((N, LAT_DIM), jnp.bfloat16),
        grid=(N // tm,),
        in_specs=[spec, spec, spec],
        out_specs=spec,
        compiler_params=pltpu.CompilerParams(dimension_semantics=("parallel",)),
    )(mu, sg, eps)


# ---------------- kernel 3a: fusion_layer1 weight-streaming matmul ------------
def _fusion_matmul_kernel(x_ref, w_ref, acc_ref):
    @pl.when(pl.program_id(1) == 0)
    def _():
        acc_ref[...] = jnp.zeros_like(acc_ref)

    # bf16 x (B, tk) @ bf16 w (tk, 128), accumulated in f32 over the K axis.
    acc_ref[...] += jnp.dot(x_ref[...], w_ref[...],
                            preferred_element_type=jnp.float32)[None, :, :]


def fusion_partials(x_bf16, w1_bf16, tk=11520, n_split=2):
    """x: (B, 230400) bf16, w1: (230400, 128) bf16 -> partial sums (n_split, B, 128) f32."""
    B, K = x_bf16.shape
    assert K == FUSE_IN and K % tk == 0 and tk % 256 == 0
    kb = K // tk
    assert kb % n_split == 0
    kb_per = kb // n_split
    return pl.pallas_call(
        _fusion_matmul_kernel,
        out_shape=jax.ShapeDtypeStruct((n_split, B, FUSE_H), jnp.float32),
        grid=(n_split, kb_per),
        in_specs=[
            pl.BlockSpec((B, tk), lambda c, k: (0, c * kb_per + k)),
            pl.BlockSpec((tk, FUSE_H), lambda c, k: (c * kb_per + k, 0)),
        ],
        out_specs=pl.BlockSpec((1, B, FUSE_H), lambda c, k: (c, 0, 0)),
        compiler_params=pltpu.CompilerParams(
            dimension_semantics=("parallel", "arbitrary")),
    )(x_bf16, w1_bf16)


# ---------------- kernel 3b: BN / residual / binary head ----------------------
def _fusion_head_kernel(part_ref, b1_ref, g1_ref, be1_ref,
                        w2_ref, b2_ref, g2_ref, be2_ref,
                        wb_ref, bb_ref, o_ref):
    def bn(x, gamma, beta):
        mean = jnp.mean(x, axis=0, keepdims=True)
        var = jnp.mean((x - mean) ** 2, axis=0, keepdims=True)   # biased var
        return (x - mean) * jax.lax.rsqrt(var + BN_EPS) * gamma + beta

    def leaky(x):
        return jnp.where(x >= 0, x, LEAKY_SLOPE * x)

    f = jnp.sum(part_ref[...], axis=0) + b1_ref[...]             # fusion_layer1
    f = leaky(bn(f, g1_ref[...], be1_ref[...]))                  # BN1 + LeakyReLU

    f = jnp.dot(f, w2_ref[...], preferred_element_type=jnp.float32) + b2_ref[...]
    f = bn(f, g2_ref[...], be2_ref[...])                         # BN2
    pre = leaky(f)

    # second fusion_layer2 takes the BN2 output (pre-LeakyReLU), as in PyTorch
    f2 = jnp.dot(f, w2_ref[...], preferred_element_type=jnp.float32) + b2_ref[...]
    f2 = bn(f2, g2_ref[...], be2_ref[...]) + pre                 # residual add
    f2 = leaky(f2)

    o_ref[...] = jnp.dot(f2, wb_ref[...],
                         preferred_element_type=jnp.float32) + bb_ref[...]


def fusion_head(partials, p):
    B = partials.shape[1]
    return pl.pallas_call(
        _fusion_head_kernel,
        out_shape=jax.ShapeDtypeStruct((B, 1), jnp.float32),
        grid=(1,),
        in_specs=[_full_spec(partials),
                  _full_spec(p["f1_b"]), _full_spec(p["bn1_g"]), _full_spec(p["bn1_b"]),
                  _full_spec(p["f2_w"]), _full_spec(p["f2_b"]),
                  _full_spec(p["bn2_g"]), _full_spec(p["bn2_b"]),
                  _full_spec(p["bin_w"]), _full_spec(p["bin_b"])],
        out_specs=pl.BlockSpec((B, 1), lambda i: (0, 0)),
    )(partials, p["f1_b"], p["bn1_g"], p["bn1_b"],
      p["f2_w"], p["f2_b"], p["bn2_g"], p["bn2_b"],
      p["bin_w"], p["bin_b"])


# ------------------------------ parameter setup --------------------------------
def _linear(key, fan_in, fan_out):
    kw, kb = jax.random.split(key)
    bound = 1.0 / jnp.sqrt(jnp.float32(fan_in))
    w = jax.random.uniform(kw, (fan_in, fan_out), jnp.float32, -bound, bound)
    b = jax.random.uniform(kb, (1, fan_out), jnp.float32, -bound, bound)
    return w, b


def init_params(key):
    ks = jax.random.split(key, 9)
    p = {}
    p["emb"] = jax.random.normal(ks[0], (N_VOCAB, EMB_DIM), jnp.float32)
    p["enc_w1"], p["enc_b1"] = _linear(ks[1], EMB_DIM, ENC_H)
    p["enc_w2"], p["enc_b2"] = _linear(ks[2], ENC_H, LAT_DIM)
    p["mu_w"], p["mu_b"] = _linear(ks[3], LAT_DIM, LAT_DIM)
    p["sg_w"], p["sg_b"] = _linear(ks[4], LAT_DIM, LAT_DIM)
    f1_w, p["f1_b"] = _linear(ks[5], FUSE_IN, FUSE_H)
    p["f1_w"] = f1_w.astype(jnp.bfloat16)          # streamed as bf16 (HBM-bound)
    p["f2_w"], p["f2_b"] = _linear(ks[6], FUSE_H, FUSE_H)
    p["bin_w"], p["bin_b"] = _linear(ks[7], FUSE_H, 1)
    p["bn1_g"] = jnp.ones((1, FUSE_H), jnp.float32)
    p["bn1_b"] = jnp.zeros((1, FUSE_H), jnp.float32)
    p["bn2_g"] = jnp.ones((1, FUSE_H), jnp.float32)
    p["bn2_b"] = jnp.zeros((1, FUSE_H), jnp.float32)
    return p


# ------------------------------ full forward -----------------------------------
def new_idea_vae_forward(params, input_x, output_x, eps_key):
    B = input_x.shape[0]
    in_tok = input_x.reshape(B, N_TOK).astype(jnp.int32)
    out_tok = output_x.reshape(B, N_TOK).astype(jnp.int32)
    # interleave input/output streams so the flattened latent layout matches
    # torch.cat(dim=2).reshape(B, -1) with zero-copy reshapes.
    tok = jnp.stack([in_tok, out_tok], axis=2)                    # (B, 900, 2)

    # frozen, deterministic encoder => exact 11-entry (mu, sigma) lookup table
    emb_pad = jnp.pad(params["emb"], ((0, VOCAB_PAD - N_VOCAB), (0, 0)))
    mu_tab, sg_tab = vocab_tables(emb_pad, params)                # (16, 128) x2

    flat_tok = tok.reshape(-1)                                    # (B*1800,)
    mu = jnp.take(mu_tab, flat_tok, axis=0)                       # (B*1800, 128)
    sg = jnp.take(sg_tab, flat_tok, axis=0)
    eps = jax.random.normal(eps_key, mu.shape, jnp.float32)

    lat = reparameterize(mu, sg, eps)                             # (B*1800, 128) bf16
    flat = lat.reshape(B, FUSE_IN)                                # fused layout, free

    partials = fusion_partials(flat, params["f1_w"])              # (2, B, 128) f32
    return fusion_head(partials, params)                          # (B, 1)


if __name__ == "__main__":
    key = jax.random.PRNGKey(0)
    k_par, k_in, k_out, k_eps = jax.random.split(key, 4)

    params = init_params(k_par)

    B = 2
    input_x = jax.random.randint(k_in, (B, 1, 30, 30), 0, N_VOCAB, dtype=jnp.int32)
    output_x = jax.random.randint(k_out, (B, 1, 30, 30), 0, N_VOCAB, dtype=jnp.int32)

    out = new_idea_vae_forward(params, input_x, output_x, k_eps)
    out = jax.block_until_ready(out)
    assert out.shape == (B, 1), out.shape
    assert bool(jnp.all(jnp.isfinite(out)))
    print("KERNEL_OK")
</pallas_src>

<mosaic_0001>
module attributes {stable_mosaic.version = 11 : i64} {
  func.func @_vocab_table_kernel(%arg0: i32, %arg1: memref<16x512xf32, #tpu.memory_space<vmem>>, %arg2: memref<512x256xf32, #tpu.memory_space<vmem>>, %arg3: memref<1x256xf32, #tpu.memory_space<vmem>>, %arg4: memref<256x128xf32, #tpu.memory_space<vmem>>, %arg5: memref<1x128xf32, #tpu.memory_space<vmem>>, %arg6: memref<128x128xf32, #tpu.memory_space<vmem>>, %arg7: memref<1x128xf32, #tpu.memory_space<vmem>>, %arg8: memref<128x128xf32, #tpu.memory_space<vmem>>, %arg9: memref<1x128xf32, #tpu.memory_space<vmem>>, %arg10: memref<16x128xf32, #tpu.memory_space<vmem>>, %arg11: memref<16x128xf32, #tpu.memory_space<vmem>>) attributes {dimension_semantics = [#tpu.dimension_semantics<arbitrary>], iteration_bounds = array<i64: 1>, scalar_prefetch = 0 : i64, scratch_operands = 0 : i64, tpu.core_type = #tpu.core_type<tc>, window_params = [{pipeline_mode = #tpu.pipeline_mode<synchronous>, transform_indices = @transform_0, window_bounds = array<i64: 16, 512>}, {pipeline_mode = #tpu.pipeline_mode<synchronous>, transform_indices = @transform_1, window_bounds = array<i64: 512, 256>}, {pipeline_mode = #tpu.pipeline_mode<synchronous>, transform_indices = @transform_2, window_bounds = array<i64: 1, 256>}, {pipeline_mode = #tpu.pipeline_mode<synchronous>, transform_indices = @transform_3, window_bounds = array<i64: 256, 128>}, {pipeline_mode = #tpu.pipeline_mode<synchronous>, transform_indices = @transform_4, window_bounds = array<i64: 1, 128>}, {pipeline_mode = #tpu.pipeline_mode<synchronous>, transform_indices = @transform_5, window_bounds = array<i64: 128, 128>}, {pipeline_mode = #tpu.pipeline_mode<synchronous>, transform_indices = @transform_6, window_bounds = array<i64: 1, 128>}, {pipeline_mode = #tpu.pipeline_mode<synchronous>, transform_indices = @transform_7, window_bounds = array<i64: 128, 128>}, {pipeline_mode = #tpu.pipeline_mode<synchronous>, transform_indices = @transform_8, window_bounds = array<i64: 1, 128>}, {pipeline_mode = #tpu.pipeline_mode<synchronous>, transform_indices = @transform_9, window_bounds = array<i64: 16, 128>}, {pipeline_mode = #tpu.pipeline_mode<synchronous>, transform_indices = @transform_10, window_bounds = array<i64: 16, 128>}]} {
    %c0 = arith.constant 0 : index
    %c0_0 = arith.constant 0 : index
    %0 = vector.load %arg1[%c0, %c0_0] : memref<16x512xf32, #tpu.memory_space<vmem>>, vector<16x512xf32>
    %c0_1 = arith.constant 0 : index
    %c0_2 = arith.constant 0 : index
    %1 = vector.load %arg2[%c0_1, %c0_2] : memref<512x256xf32, #tpu.memory_space<vmem>>, vector<512x256xf32>
    %cst = arith.constant dense<0.000000e+00> : vector<16x256xf32>
    %2 = tpu.matmul %0, %1, %cst {dimension_numbers = #tpu.dot_dimension_numbers<[1], [0], [0], [1], [0, 0, 1, 1], [], []>} : vector<16x512xf32>, vector<512x256xf32>, vector<16x256xf32> -> vector<16x256xf32>
    %c0_3 = arith.constant 0 : index
    %c0_4 = arith.constant 0 : index
    %3 = vector.load %arg3[%c0_3, %c0_4] : memref<1x256xf32, #tpu.memory_space<vmem>>, vector<1x256xf32>
    %4 = vector.broadcast %3 : vector<1x256xf32> to vector<16x256xf32>
    %5 = arith.addf %2, %4 : vector<16x256xf32>
    %cst_5 = arith.constant 0.000000e+00 : f32
    %6 = vector.broadcast %cst_5 : f32 to vector<16x256xf32>
    %7 = arith.maximumf %5, %6 : vector<16x256xf32>
    %c0_6 = arith.constant 0 : index
    %c0_7 = arith.constant 0 : index
    %8 = vector.load %arg4[%c0_6, %c0_7] : memref<256x128xf32, #tpu.memory_space<vmem>>, vector<256x128xf32>
    %cst_8 = arith.constant dense<0.000000e+00> : vector<16x128xf32>
    %9 = tpu.matmul %7, %8, %cst_8 {dimension_numbers = #tpu.dot_dimension_numbers<[1], [0], [0], [1], [0, 0, 1, 1], [], []>} : vector<16x256xf32>, vector<256x128xf32>, vector<16x128xf32> -> vector<16x128xf32>
    %c0_9 = arith.constant 0 : index
    %c0_10 = arith.constant 0 : index
    %10 = vector.load %arg5[%c0_9, %c0_10] : memref<1x128xf32, #tpu.memory_space<vmem>>, vector<1x128xf32>
    %11 = vector.broadcast %10 : vector<1x128xf32> to vector<16x128xf32>
    %12 = arith.addf %9, %11 : vector<16x128xf32>
    %cst_11 = arith.constant 0.000000e+00 : f32
    %13 = vector.broadcast %cst_11 : f32 to vector<16x128xf32>
    %14 = arith.maximumf %12, %13 : vector<16x128xf32>
    %c0_12 = arith.constant 0 : index
    %c0_13 = arith.constant 0 : index
    %15 = vector.load %arg6[%c0_12, %c0_13] : memref<128x128xf32, #tpu.memory_space<vmem>>, vector<128x128xf32>
    %cst_14 = arith.constant dense<0.000000e+00> : vector<16x128xf32>
    %16 = tpu.matmul %14, %15, %cst_14 {dimension_numbers = #tpu.dot_dimension_numbers<[1], [0], [0], [1], [0, 0, 1, 1], [], []>} : vector<16x128xf32>, vector<128x128xf32>, vector<16x128xf32> -> vector<16x128xf32>
    %c0_15 = arith.constant 0 : index
    %c0_16 = arith.constant 0 : index
    %17 = vector.load %arg7[%c0_15, %c0_16] : memref<1x128xf32, #tpu.memory_space<vmem>>, vector<1x128xf32>
    %18 = vector.broadcast %17 : vector<1x128xf32> to vector<16x128xf32>
    %19 = arith.addf %16, %18 : vector<16x128xf32>
    %c0_17 = arith.constant 0 : index
    %c0_18 = arith.constant 0 : index
    %20 = vector.load %arg10[%c0_17, %c0_18] : memref<16x128xf32, #tpu.memory_space<vmem>>, vector<16x128xf32>
    tpu.vector_store %arg10[%c0_17, %c0_18], %19 {strides = array<i32>} : memref<16x128xf32, #tpu.memory_space<vmem>>, vector<16x128xf32>,
    %c0_19 = arith.constant 0 : index
    %c0_20 = arith.constant 0 : index
    %21 = vector.load %arg8[%c0_19, %c0_20] : memref<128x128xf32, #tpu.memory_space<vmem>>, vector<128x128xf32>
    %cst_21 = arith.constant dense<0.000000e+00> : vector<16x128xf32>
    %22 = tpu.matmul %14, %21, %cst_21 {dimension_numbers = #tpu.dot_dimension_numbers<[1], [0], [0], [1], [0, 0, 1, 1], [], []>} : vector<16x128xf32>, vector<128x128xf32>, vector<16x128xf32> -> vector<16x128xf32>
    %c0_22 = arith.constant 0 : index
    %c0_23 = arith.constant 0 : index
    %23 = vector.load %arg9[%c0_22, %c0_23] : memref<1x128xf32, #tpu.memory_space<vmem>>, vector<1x128xf32>
    %24 = vector.broadcast %23 : vector<1x128xf32> to vector<16x128xf32>
    %25 = arith.addf %22, %24 : vector<16x128xf32>
    %c0_24 = arith.constant 0 : index
    %c0_25 = arith.constant 0 : index
    %26 = vector.load %arg11[%c0_24, %c0_25] : memref<16x128xf32, #tpu.memory_space<vmem>>, vector<16x128xf32>
    tpu.vector_store %arg11[%c0_24, %c0_25], %25 {strides = array<i32>} : memref<16x128xf32, #tpu.memory_space<vmem>>, vector<16x128xf32>,
    return
  }
  func.func @transform_0(%arg0: i32) -> (i32, i32) {
    %c0_i32 = arith.constant 0 : i32
    %c0_i32_0 = arith.constant 0 : i32
    %c0_i32_1 = arith.constant 0 : i32
    return %c0_i32, %c0_i32_0 : i32, i32
  }
  func.func @transform_1(%arg0: i32) -> (i32, i32) {
    %c0_i32 = arith.constant 0 : i32
    %c0_i32_0 = arith.constant 0 : i32
    %c0_i32_1 = arith.constant 0 : i32
    return %c0_i32, %c0_i32_0 : i32, i32
  }
  func.func @transform_2(%arg0: i32) -> (i32, i32) {
    %c0_i32 = arith.constant 0 : i32
    %c0_i32_0 = arith.constant 0 : i32
    %c0_i32_1 = arith.constant 0 : i32
    return %c0_i32, %c0_i32_0 : i32, i32
  }
  func.func @transform_3(%arg0: i32) -> (i32, i32) {
    %c0_i32 = arith.constant 0 : i32
    %c0_i32_0 = arith.constant 0 : i32
    %c0_i32_1 = arith.constant 0 : i32
    return %c0_i32, %c0_i32_0 : i32, i32
  }
  func.func @transform_4(%arg0: i32) -> (i32, i32) {
    %c0_i32 = arith.constant 0 : i32
    %c0_i32_0 = arith.constant 0 : i32
    %c0_i32_1 = arith.constant 0 : i32
    return %c0_i32, %c0_i32_0 : i32, i32
  }
  func.func @transform_5(%arg0: i32) -> (i32, i32) {
    %c0_i32 = arith.constant 0 : i32
    %c0_i32_0 = arith.constant 0 : i32
    %c0_i32_1 = arith.constant 0 : i32
    return %c0_i32, %c0_i32_0 : i32, i32
  }
  func.func @transform_6(%arg0: i32) -> (i32, i32) {
    %c0_i32 = arith.constant 0 : i32
    %c0_i32_0 = arith.constant 0 : i32
    %c0_i32_1 = arith.constant 0 : i32
    return %c0_i32, %c0_i32_0 : i32, i32
  }
  func.func @transform_7(%arg0: i32) -> (i32, i32) {
    %c0_i32 = arith.constant 0 : i32
    %c0_i32_0 = arith.constant 0 : i32
    %c0_i32_1 = arith.constant 0 : i32
    return %c0_i32, %c0_i32_0 : i32, i32
  }
  func.func @transform_8(%arg0: i32) -> (i32, i32) {
    %c0_i32 = arith.constant 0 : i32
    %c0_i32_0 = arith.constant 0 : i32
    %c0_i32_1 = arith.constant 0 : i32
    return %c0_i32, %c0_i32_0 : i32, i32
  }
  func.func @transform_9(%arg0: i32) -> (i32, i32) {
    %c0_i32 = arith.constant 0 : i32
    %c0_i32_0 = arith.constant 0 : i32
    %c0_i32_1 = arith.constant 0 : i32
    return %c0_i32, %c0_i32_0 : i32, i32
  }
  func.func @transform_10(%arg0: i32) -> (i32, i32) {
    %c0_i32 = arith.constant 0 : i32
    %c0_i32_0 = arith.constant 0 : i32
    %c0_i32_1 = arith.constant 0 : i32
    return %c0_i32, %c0_i32_0 : i32, i32
  }
}

</mosaic_0001>

<llo_original>
// kernel: tpu_custom_call.1
$region0: #{tpu_custom_call.1}
  #allocation0 [shape = 'u32[]', space=smem, size = 0x4, offset = 0x4, fixed_abs, tag = 'smem constant byte address 0x4 - core index']
  #allocation1 [shape = 'u32[144,128]{1,0:T(1,128)}', space=vmem, size = 0x12000, scoped, tag = 'internal scratch']
  %s0 = inlined_call_operand.hbm [shape: f32[16,512], index: 0, kind: input, shape index: {}]
  %s1 = inlined_call_operand.hbm [shape: f32[512,256], index: 1, kind: input, shape index: {}]
  %s2 = inlined_call_operand.vmem [shape: f32[1,256], index: 2, kind: input, shape index: {}]
  %s3 = inlined_call_operand.hbm [shape: f32[256,128], index: 3, kind: input, shape index: {}]
  %s4 = inlined_call_operand.vmem [shape: f32[1,128], index: 4, kind: input, shape index: {}]
  %s5 = inlined_call_operand.hbm [shape: f32[128,128], index: 5, kind: input, shape index: {}]
  %s6 = inlined_call_operand.vmem [shape: f32[1,128], index: 6, kind: input, shape index: {}]
  %s7 = inlined_call_operand.hbm [shape: f32[128,128], index: 7, kind: input, shape index: {}]
  %s8 = inlined_call_operand.vmem [shape: f32[1,128], index: 8, kind: input, shape index: {}]
  %s9 = inlined_call_operand.hbm [shape: f32[16,128], index: 9, kind: output, shape index: {0}]
  %s10 = inlined_call_operand.hbm [shape: f32[16,128], index: 10, kind: output, shape index: {1}]
  %11 = xla_tuple %s9, %s10
  %s12 = sld [smem:[#allocation0]]
  $region74: #{tpu_custom_call.1} parent=0
    _
  %s14 = ssub.s32 1, %s12
  %s15 = scalar_select 0, %s14, %s12
  $region1: #{tpu_custom_call.1} parent=0
    #allocation2 [shape = 'u8[32768]{0}', space=vmem, size = 0x8000, scoped, tag = 'input window, operand 0, single buffered']
    #allocation3 [shape = 's32[1]{0}', space=sflag, size = 0x4, scoped, tag = 'scoped memory for tpu_custom_call.1']
    #allocation4 [shape = 's32[1]{0}', space=sflag, size = 0x4, scoped, tag = 'scoped memory for tpu_custom_call.1']
    #allocation5 [shape = 'u8[524288]{0}', space=vmem, size = 0x80000, scoped, tag = 'input window, operand 1, single buffered']
    #allocation6 [shape = 's32[1]{0}', space=sflag, size = 0x4, scoped, tag = 'scoped memory for tpu_custom_call.1']
    #allocation7 [shape = 'u8[131072]{0}', space=vmem, size = 0x20000, scoped, tag = 'input window, operand 3, single buffered']
    #allocation8 [shape = 'u8[65536]{0}', space=vmem, size = 0x10000, scoped, tag = 'input window, operand 5, single buffered']
    #allocation9 [shape = 's32[1]{0}', space=sflag, size = 0x4, scoped, tag = 'scoped memory for tpu_custom_call.1']
    #allocation10 [shape = 'u8[65536]{0}', space=vmem, size = 0x10000, scoped, tag = 'input window, operand 7, single buffered']
    #allocation11 [shape = 'u8[8192]{0}', space=vmem, size = 0x2000, scoped, tag = 'output window, operand 0, single buffered']
    #allocation12 [shape = 'u8[8192]{0}', space=vmem, size = 0x2000, scoped, tag = 'output window, operand 1, single buffered']
    #allocation13 [shape = 's32[1]{0}', space=sflag, size = 0x4, scoped, tag = 'scoped memory for tpu_custom_call.1']
    %16 = vsyncpa [#allocation3], 0
    %17 = vsyncpa [#allocation6], 0
    %18 = vsyncpa [#allocation9], 0
    %19 = vsyncpa [#allocation4], 0
    %20 = vsyncpa [#allocation13], 0
    // Predicated region
    $region2: #{tpu_custom_call.1} parent=1 // pred_check
      _
    $region3: #{tpu_custom_call.1} parent=1 // pred_check_branch
      %22 = sbr.rel (0) target = $region5
    $region4: #{tpu_custom_call.1} parent=1 // pred_region
      %s24 = ssub.s32 1024, 1024
      %25 = vsyncadd [#allocation3], %s24
      %s26 = sshll.u32 [#allocation2], 4
      %s27 = int_to_ptr.vmem [resolvable:$true] %s26
      %32 = dma.hbm_to_vmem [thread:$0]  %s0, 1024, %s27, [#allocation3], 512, 512, 32
    $region5: #{tpu_custom_call.1} parent=1 // pred_fallthru
      _
    // Predicated region
    $region6: #{tpu_custom_call.1} parent=1 // pred_check
      _
    $region7: #{tpu_custom_call.1} parent=1 // pred_check_branch
      %34 = sbr.rel (0) target = $region9
    $region8: #{tpu_custom_call.1} parent=1 // pred_region
      %s36 = ssub.s32 16384, 16384
      %37 = vsyncadd [#allocation6], %s36
      %s38 = sshll.u32 [#allocation5], 4
      %s39 = int_to_ptr.vmem [resolvable:$true] %s38
      %44 = dma.hbm_to_vmem [thread:$0]  %s1, 16384, %s39, [#allocation6], 256, 256, 16
    $region9: #{tpu_custom_call.1} parent=1 // pred_fallthru
      _
    // Predicated region
    $region10: #{tpu_custom_call.1} parent=1 // pred_check
      _
    $region11: #{tpu_custom_call.1} parent=1 // pred_check_branch
      %46 = sbr.rel (0) target = $region13
    $region12: #{tpu_custom_call.1} parent=1 // pred_region
      _
    $region13: #{tpu_custom_call.1} parent=1 // pred_fallthru
      _
    // Predicated region
    $region14: #{tpu_custom_call.1} parent=1 // pred_check
      _
    $region15: #{tpu_custom_call.1} parent=1 // pred_check_branch
      %48 = sbr.rel (0) target = $region17
    $region16: #{tpu_custom_call.1} parent=1 // pred_region
      %s50 = ssub.s32 4096, 4096
      %51 = vsyncadd [#allocation6], %s50
      %s52 = sshll.u32 [#allocation7], 4
      %s53 = int_to_ptr.vmem [resolvable:$true] %s52
      %58 = dma.hbm_to_vmem [thread:$0]  %s3, 4096, %s53, [#allocation6], 128, 128, 8
    $region17: #{tpu_custom_call.1} parent=1 // pred_fallthru
      _
    // Predicated region
    $region18: #{tpu_custom_call.1} parent=1 // pred_check
      _
    $region19: #{tpu_custom_call.1} parent=1 // pred_check_branch
      %60 = sbr.rel (0) target = $region21
    $region20: #{tpu_custom_call.1} parent=1 // pred_region
      _
    $region21: #{tpu_custom_call.1} parent=1 // pred_fallthru
      _
    // Predicated region
    $region22: #{tpu_custom_call.1} parent=1 // pred_check
      _
    $region23: #{tpu_custom_call.1} parent=1 // pred_check_branch
      %62 = sbr.rel (0) target = $region25
    $region24: #{tpu_custom_call.1} parent=1 // pred_region
      %s64 = ssub.s32 2048, 2048
      %65 = vsyncadd [#allocation9], %s64
      %s66 = sshll.u32 [#allocation8], 4
      %s67 = int_to_ptr.vmem [resolvable:$true] %s66
      %72 = dma.hbm_to_vmem [thread:$0]  %s5, 2048, %s67, [#allocation9], 128, 128, 8
    $region25: #{tpu_custom_call.1} parent=1 // pred_fallthru
      _
    // Predicated region
    $region26: #{tpu_custom_call.1} parent=1 // pred_check
      _
    $region27: #{tpu_custom_call.1} parent=1 // pred_check_branch
      %74 = sbr.rel (0) target = $region29
    $region28: #{tpu_custom_call.1} parent=1 // pred_region
      _
    $region29: #{tpu_custom_call.1} parent=1 // pred_fallthru
      _
    // Predicated region
    $region30: #{tpu_custom_call.1} parent=1 // pred_check
      _
    $region31: #{tpu_custom_call.1} parent=1 // pred_check_branch
      %76 = sbr.rel (0) target = $region33
    $region32: #{tpu_custom_call.1} parent=1 // pred_region
      %s78 = ssub.s32 2048, 2048
      %79 = vsyncadd [#allocation9], %s78
      %s80 = sshll.u32 [#allocation10], 4
      %s81 = int_to_ptr.vmem [resolvable:$true] %s80
      %86 = dma.hbm_to_vmem [thread:$0]  %s7, 2048, %s81, [#allocation9], 128, 128, 8
    $region33: #{tpu_custom_call.1} parent=1 // pred_fallthru
      _
    // Predicated region
    $region34: #{tpu_custom_call.1} parent=1 // pred_check
      _
    $region35: #{tpu_custom_call.1} parent=1 // pred_check_branch
      %88 = sbr.rel (0) target = $region37
    $region36: #{tpu_custom_call.1} parent=1 // pred_region
      _
    $region37: #{tpu_custom_call.1} parent=1 // pred_fallthru
      _
    // Predicated region
    $region38: #{tpu_custom_call.1} parent=1 // pred_check
      _
    $region39: #{tpu_custom_call.1} parent=1 // pred_check_branch
      %90 = sbr.rel (0) target = $region41
    $region40: #{tpu_custom_call.1} parent=1 // pred_region
      %91 = dma.done [#allocation3], 1024
    $region41: #{tpu_custom_call.1} parent=1 // pred_fallthru
      _
    // Predicated region
    $region42: #{tpu_custom_call.1} parent=1 // pred_check
      _
    $region43: #{tpu_custom_call.1} parent=1 // pred_check_branch
      %93 = sbr.rel (0) target = $region45
    $region44: #{tpu_custom_call.1} parent=1 // pred_region
      %94 = dma.done [#allocation6], 16384
    $region45: #{tpu_custom_call.1} parent=1 // pred_fallthru
      _
    // Predicated region
    $region46: #{tpu_custom_call.1} parent=1 // pred_check
      _
    $region47: #{tpu_custom_call.1} parent=1 // pred_check_branch
      %96 = sbr.rel (0) target = $region49
    $region48: #{tpu_custom_call.1} parent=1 // pred_region
      %97 = dma.done [#allocation6], 4096
    $region49: #{tpu_custom_call.1} parent=1 // pred_fallthru
      _
    // Predicated region
    $region50: #{tpu_custom_call.1} parent=1 // pred_check
      _
    $region51: #{tpu_custom_call.1} parent=1 // pred_check_branch
      %99 = sbr.rel (0) target = $region53
    $region52: #{tpu_custom_call.1} parent=1 // pred_region
      %100 = dma.done [#allocation9], 2048
    $region53: #{tpu_custom_call.1} parent=1 // pred_fallthru
      _
    // Predicated region
    $region54: #{tpu_custom_call.1} parent=1 // pred_check
      _
    $region55: #{tpu_custom_call.1} parent=1 // pred_check_branch
      %102 = sbr.rel (0) target = $region57
    $region56: #{tpu_custom_call.1} parent=1 // pred_region
      %103 = dma.done [#allocation9], 2048
    $region57: #{tpu_custom_call.1} parent=1 // pred_fallthru
      _
    %v104 = vld [vmem:[#allocation2] sm:$0xff]
    %v105 = vld [vmem:[#allocation2 + $0x8] sm:$0xff]
    %v106 = vld [vmem:[#allocation2 + $0x10] sm:$0xff]
    %v107 = vld [vmem:[#allocation2 + $0x18] sm:$0xff]
    %v108 = vld [vmem:[#allocation2 + $0x20] sm:$0xff]
    %v109 = vld [vmem:[#allocation2 + $0x28] sm:$0xff]
    %v110 = vld [vmem:[#allocation2 + $0x30] sm:$0xff]
    %v111 = vld [vmem:[#allocation2 + $0x38] sm:$0xff]
    %v112 = vld [vmem:[#allocation5] sm:$0xff]
    %v113 = vld [vmem:[#allocation5 + $0x8] sm:$0xff]
    %v114 = vld [vmem:[#allocation5 + $0x10] sm:$0xff]
    %v115 = vld [vmem:[#allocation5 + $0x18] sm:$0xff]
    %v116 = vld [vmem:[#allocation5 + $0x20] sm:$0xff]
    %v117 = vld [vmem:[#allocation5 + $0x28] sm:$0xff]
    %v118 = vld [vmem:[#allocation5 + $0x30] sm:$0xff]
    %v119 = vld [vmem:[#allocation5 + $0x38] sm:$0xff]
    %v120 = vld [vmem:[#allocation5 + $0x40] sm:$0xff]
    %v121 = vld [vmem:[#allocation5 + $0x48] sm:$0xff]
    %v122 = vld [vmem:[#allocation5 + $0x50] sm:$0xff]
    %v123 = vld [vmem:[#allocation5 + $0x58] sm:$0xff]
    %v124 = vld [vmem:[#allocation5 + $0x60] sm:$0xff]
    %v125 = vld [vmem:[#allocation5 + $0x68] sm:$0xff]
    %v126 = vld [vmem:[#allocation5 + $0x70] sm:$0xff]
    %v127 = vld [vmem:[#allocation5 + $0x78] sm:$0xff]
    %v128 = vld [vmem:[#allocation5 + $0x80] sm:$0xff]
    %v129 = vld [vmem:[#allocation5 + $0x88] sm:$0xff]
    %v130 = vld [vmem:[#allocation5 + $0x90] sm:$0xff]
    %v131 = vld [vmem:[#allocation5 + $0x98] sm:$0xff]
    %v132 = vld [vmem:[#allocation5 + $0xa0] sm:$0xff]
    %v133 = vld [vmem:[#allocation5 + $0xa8] sm:$0xff]
    %v134 = vld [vmem:[#allocation5 + $0xb0] sm:$0xff]
    %v135 = vld [vmem:[#allocation5 + $0xb8] sm:$0xff]
    %v136 = vld [vmem:[#allocation5 + $0xc0] sm:$0xff]
    %v137 = vld [vmem:[#allocation5 + $0xc8] sm:$0xff]
    %v138 = vld [vmem:[#allocation5 + $0xd0] sm:$0xff]
    %v139 = vld [vmem:[#allocation5 + $0xd8] sm:$0xff]
    %v140 = vld [vmem:[#allocation5 + $0xe0] sm:$0xff]
    %v141 = vld [vmem:[#allocation5 + $0xe8] sm:$0xff]
    %v142 = vld [vmem:[#allocation5 + $0xf0] sm:$0xff]
    %v143 = vld [vmem:[#allocation5 + $0xf8] sm:$0xff]
    %v144 = vld [vmem:[#allocation5 + $0x100] sm:$0xff]
    %v145 = vld [vmem:[#allocation5 + $0x108] sm:$0xff]
    %v146 = vld [vmem:[#allocation5 + $0x110] sm:$0xff]
    %v147 = vld [vmem:[#allocation5 + $0x118] sm:$0xff]
    %v148 = vld [vmem:[#allocation5 + $0x120] sm:$0xff]
    %v149 = vld [vmem:[#allocation5 + $0x128] sm:$0xff]
    %v150 = vld [vmem:[#allocation5 + $0x130] sm:$0xff]
    %v151 = vld [vmem:[#allocation5 + $0x138] sm:$0xff]
    %v152 = vld [vmem:[#allocation5 + $0x140] sm:$0xff]
    %v153 = vld [vmem:[#allocation5 + $0x148] sm:$0xff]
    %v154 = vld [vmem:[#allocation5 + $0x150] sm:$0xff]
    %v155 = vld [vmem:[#allocation5 + $0x158] sm:$0xff]
    %v156 = vld [vmem:[#allocation5 + $0x160] sm:$0xff]
    %v157 = vld [vmem:[#allocation5 + $0x168] sm:$0xff]
    %v158 = vld [vmem:[#allocation5 + $0x170] sm:$0xff]
    %v159 = vld [vmem:[#allocation5 + $0x178] sm:$0xff]
    %v160 = vld [vmem:[#allocation5 + $0x180] sm:$0xff]
    %v161 = vld [vmem:[#allocation5 + $0x188] sm:$0xff]
    %v162 = vld [vmem:[#allocation5 + $0x190] sm:$0xff]
    %v163 = vld [vmem:[#allocation5 + $0x198] sm:$0xff]
    %v164 = vld [vmem:[#allocation5 + $0x1a0] sm:$0xff]
    %v165 = vld [vmem:[#allocation5 + $0x1a8] sm:$0xff]
    %v166 = vld [vmem:[#allocation5 + $0x1b0] sm:$0xff]
    %v167 = vld [vmem:[#allocation5 + $0x1b8] sm:$0xff]
    %v168 = vld [vmem:[#allocation5 + $0x1c0] sm:$0xff]
    %v169 = vld [vmem:[#allocation5 + $0x1c8] sm:$0xff]
    %v170 = vld [vmem:[#allocation5 + $0x1d0] sm:$0xff]
    %v171 = vld [vmem:[#allocation5 + $0x1d8] sm:$0xff]
    %v172 = vld [vmem:[#allocation5 + $0x1e0] sm:$0xff]
    %v173 = vld [vmem:[#allocation5 + $0x1e8] sm:$0xff]
    %v174 = vld [vmem:[#allocation5 + $0x1f0] sm:$0xff]
    %v175 = vld [vmem:[#allocation5 + $0x1f8] sm:$0xff]
    %v176 = vld [vmem:[#allocation5 + $0x200] sm:$0xff]
    %v177 = vld [vmem:[#allocation5 + $0x208] sm:$0xff]
    %v178 = vld [vmem:[#allocation5 + $0x210] sm:$0xff]
    %v179 = vld [vmem:[#allocation5 + $0x218] sm:$0xff]
    %v180 = vld [vmem:[#allocation5 + $0x220] sm:$0xff]
    %v181 = vld [vmem:[#allocation5 + $0x228] sm:$0xff]
    %v182 = vld [vmem:[#allocation5 + $0x230] sm:$0xff]
    %v183 = vld [vmem:[#allocation5 + $0x238] sm:$0xff]
    %v184 = vld [vmem:[#allocation5 + $0x240] sm:$0xff]
    %v185 = vld [vmem:[#allocation5 + $0x248] sm:$0xff]
    %v186 = vld [vmem:[#allocation5 + $0x250] sm:$0xff]
    %v187 = vld [vmem:[#allocation5 + $0x258] sm:$0xff]
    %v188 = vld [vmem:[#allocation5 + $0x260] sm:$0xff]
    %v189 = vld [vmem:[#allocation5 + $0x268] sm:$0xff]
    %v190 = vld [vmem:[#allocation5 + $0x270] sm:$0xff]
    %v191 = vld [vmem:[#allocation5 + $0x278] sm:$0xff]
    %v192 = vld [vmem:[#allocation5 + $0x280] sm:$0xff]
    %v193 = vld [vmem:[#allocation5 + $0x288] sm:$0xff]
    %v194 = vld [vmem:[#allocation5 + $0x290] sm:$0xff]
    %v195 = vld [vmem:[#allocation5 + $0x298] sm:$0xff]
    %v196 = vld [vmem:[#allocation5 + $0x2a0] sm:$0xff]
    %v197 = vld [vmem:[#allocation5 + $0x2a8] sm:$0xff]
    %v198 = vld [vmem:[#allocation5 + $0x2b0] sm:$0xff]
    %v199 = vld [vmem:[#allocation5 + $0x2b8] sm:$0xff]
    %v200 = vld [vmem:[#allocation5 + $0x2c0] sm:$0xff]
    %v201 = vld [vmem:[#allocation5 + $0x2c8] sm:$0xff]
    %v202 = vld [vmem:[#allocation5 + $0x2d0] sm:$0xff]
    %v203 = vld [vmem:[#allocation5 + $0x2d8] sm:$0xff]
    %v204 = vld [vmem:[#allocation5 + $0x2e0] sm:$0xff]
    %v205 = vld [vmem:[#allocation5 + $0x2e8] sm:$0xff]
    %v206 = vld [vmem:[#allocation5 + $0x2f0] sm:$0xff]
    %v207 = vld [vmem:[#allocation5 + $0x2f8] sm:$0xff]
    %v208 = vld [vmem:[#allocation5 + $0x300] sm:$0xff]
    %v209 = vld [vmem:[#allocation5 + $0x308] sm:$0xff]
    %v210 = vld [vmem:[#allocation5 + $0x310] sm:$0xff]
    %v211 = vld [vmem:[#allocation5 + $0x318] sm:$0xff]
    %v212 = vld [vmem:[#allocation5 + $0x320] sm:$0xff]
    %v213 = vld [vmem:[#allocation5 + $0x328] sm:$0xff]
    %v214 = vld [vmem:[#allocation5 + $0x330] sm:$0xff]
    %v215 = vld [vmem:[#allocation5 + $0x338] sm:$0xff]
    %v216 = vld [vmem:[#allocation5 + $0x340] sm:$0xff]
    %v217 = vld [vmem:[#allocation5 + $0x348] sm:$0xff]
    %v218 = vld [vmem:[#allocation5 + $0x350] sm:$0xff]
    %v219 = vld [vmem:[#allocation5 + $0x358] sm:$0xff]
    %v220 = vld [vmem:[#allocation5 + $0x360] sm:$0xff]
    %v221 = vld [vmem:[#allocation5 + $0x368] sm:$0xff]
    %v222 = vld [vmem:[#allocation5 + $0x370] sm:$0xff]
    %v223 = vld [vmem:[#allocation5 + $0x378] sm:$0xff]
    %v224 = vld [vmem:[#allocation5 + $0x380] sm:$0xff]
    %v225 = vld [vmem:[#allocation5 + $0x388] sm:$0xff]
    %v226 = vld [vmem:[#allocation5 + $0x390] sm:$0xff]
    %v227 = vld [vmem:[#allocation5 + $0x398] sm:$0xff]
    %v228 = vld [vmem:[#allocation5 + $0x3a0] sm:$0xff]
    %v229 = vld [vmem:[#allocation5 + $0x3a8] sm:$0xff]
    %v230 = vld [vmem:[#allocation5 + $0x3b0] sm:$0xff]
    %v231 = vld [vmem:[#allocation5 + $0x3b8] sm:$0xff]
    %v232 = vld [vmem:[#allocation5 + $0x3c0] sm:$0xff]
    %v233 = vld [vmem:[#allocation5 + $0x3c8] sm:$0xff]
    %v234 = vld [vmem:[#allocation5 + $0x3d0] sm:$0xff]
    %v235 = vld [vmem:[#allocation5 + $0x3d8] sm:$0xff]
    %v236 = vld [vmem:[#allocation5 + $0x3e0] sm:$0xff]
    %v237 = vld [vmem:[#allocation5 + $0x3e8] sm:$0xff]
    %v238 = vld [vmem:[#allocation5 + $0x3f0] sm:$0xff]
    %v239 = vld [vmem:[#allocation5 + $0x3f8] sm:$0xff]
    %v240 = vld [vmem:[%s2] sm:$0x3]
    %v242 = vlaneseq
    %v243 = vshrl.u32 %v242, 7
    %v244 = vsub.s32 0, %v243
    %v245 = vrot.slane %v240, %v244
    %v246 = vlaneseq
    %v247 = vshrl.u32 %v246, 7
    %v248 = vsub.s32 1, %v247
    %v249 = vrot.slane %v240, %v248
    %252 = vmatprep.subr.mxu0 %v113
    %253 = vmatpush1.msra.mxu0 %v112
    %254 = vmatprep.subr.mxu0 %v115
    %255 = vmatpush1.msra.mxu0 %v114
    %256 = vmatprep.subr.mxu0 %v117
    %257 = vmatpush1.msra.mxu0 %v116
    %258 = vmatprep.subr.mxu0 %v119
    %259 = vmatpush1.msra.mxu0 %v118
    %260 = vmatprep.subr.mxu0 %v121
    %261 = vmatpush1.msra.mxu0 %v120
    %262 = vmatprep.subr.mxu0 %v123
    %263 = vmatpush1.msra.mxu0 %v122
    %264 = vmatprep.subr.mxu0 %v125
    %265 = vmatpush1.msra.mxu0 %v124
    %266 = vmatprep.subr.mxu0 %v127
    %267 = vmatpush1.msra.mxu0 %v126
    %268 = vmatprep.subr.mxu0 %v129
    %269 = vmatpush1.msra.mxu0 %v128
    %270 = vmatprep.subr.mxu0 %v131
    %271 = vmatpush1.msra.mxu0 %v130
    %272 = vmatprep.subr.mxu0 %v133
    %273 = vmatpush1.msra.mxu0 %v132
    %274 = vmatprep.subr.mxu0 %v135
    %275 = vmatpush1.msra.mxu0 %v134
    %276 = vmatprep.subr.mxu0 %v137
    %277 = vmatpush1.msra.mxu0 %v136
    %278 = vmatprep.subr.mxu0 %v139
    %279 = vmatpush1.msra.mxu0 %v138
    %280 = vmatprep.subr.mxu0 %v141
    %281 = vmatpush1.msra.mxu0 %v140
    %282 = vmatprep.subr.mxu0 %v143
    %283 = vmatpush1.msra.mxu0 %v142
    %284 = vmatprep.subr.mxu0 %v145
    %285 = vmatpush1.msra.mxu0 %v144
    %286 = vmatprep.subr.mxu0 %v147
    %287 = vmatpush1.msra.mxu0 %v146
    %288 = vmatprep.subr.mxu0 %v149
    %289 = vmatpush1.msra.mxu0 %v148
    %290 = vmatprep.subr.mxu0 %v151
    %291 = vmatpush1.msra.mxu0 %v150
    %292 = vmatprep.subr.mxu0 %v153
    %293 = vmatpush1.msra.mxu0 %v152
    %294 = vmatprep.subr.mxu0 %v155
    %295 = vmatpush1.msra.mxu0 %v154
    %296 = vmatprep.subr.mxu0 %v157
    %297 = vmatpush1.msra.mxu0 %v156
    %298 = vmatprep.subr.mxu0 %v159
    %299 = vmatpush1.msra.mxu0 %v158
    %300 = vmatprep.subr.mxu0 %v161
    %301 = vmatpush1.msra.mxu0 %v160
    %302 = vmatprep.subr.mxu0 %v163
    %303 = vmatpush1.msra.mxu0 %v162
    %304 = vmatprep.subr.mxu0 %v165
    %305 = vmatpush1.msra.mxu0 %v164
    %306 = vmatprep.subr.mxu0 %v167
    %307 = vmatpush1.msra.mxu0 %v166
    %308 = vmatprep.subr.mxu0 %v169
    %309 = vmatpush1.msra.mxu0 %v168
    %310 = vmatprep.subr.mxu0 %v171
    %311 = vmatpush1.msra.mxu0 %v170
    %312 = vmatprep.subr.mxu0 %v173
    %313 = vmatpush1.msra.mxu0 %v172
    %314 = vmatprep.subr.mxu0 %v175
    %315 = vmatpush1.msra.mxu0 %v174
    %316 = vmatprep.mubr.f32.mxu0 %v105
    %317 = vmatmul.mubr.f32.gmra.mrb[0].mxu0 %v104
    %v318 = vpop.f32.mrb[0].mxu0
    %v319 = vadd.f32 %v245, %v318
    %v320 = vpop.f32.mrb[0].mxu0
    %v321 = vadd.f32 %v249, %v320
    %322 = vmatprep.mubr.f32.mxu0 %v109
    %323 = vmatmul.mubr.f32.gmra.mrb[0].mxu0 %v108
    %v324 = vpop.f32.mrb[0].mxu0
    %v325 = vadd.f32 %v245, %v324
    %v326 = vpop.f32.mrb[0].mxu0
    %v327 = vadd.f32 %v249, %v326
    %328 = vdwg.mxu0
    %329 = vmatprep.subr.mxu0 %v177
    %330 = vmatpush1.msra.mxu0 %v176
    %331 = vmatprep.subr.mxu0 %v179
    %332 = vmatpush1.msra.mxu0 %v178
    %333 = vmatprep.subr.mxu0 %v181
    %334 = vmatpush1.msra.mxu0 %v180
    %335 = vmatprep.subr.mxu0 %v183
    %336 = vmatpush1.msra.mxu0 %v182
    %337 = vmatprep.subr.mxu0 %v185
    %338 = vmatpush1.msra.mxu0 %v184
    %339 = vmatprep.subr.mxu0 %v187
    %340 = vmatpush1.msra.mxu0 %v186
    %341 = vmatprep.subr.mxu0 %v189
    %342 = vmatpush1.msra.mxu0 %v188
    %343 = vmatprep.subr.mxu0 %v191
    %344 = vmatpush1.msra.mxu0 %v190
    %345 = vmatprep.subr.mxu0 %v193
    %346 = vmatpush1.msra.mxu0 %v192
    %347 = vmatprep.subr.mxu0 %v195
    %348 = vmatpush1.msra.mxu0 %v194
    %349 = vmatprep.subr.mxu0 %v197
    %350 = vmatpush1.msra.mxu0 %v196
    %351 = vmatprep.subr.mxu0 %v199
    %352 = vmatpush1.msra.mxu0 %v198
    %353 = vmatprep.subr.mxu0 %v201
    %354 = vmatpush1.msra.mxu0 %v200
    %355 = vmatprep.subr.mxu0 %v203
    %356 = vmatpush1.msra.mxu0 %v202
    %357 = vmatprep.subr.mxu0 %v205
    %358 = vmatpush1.msra.mxu0 %v204
    %359 = vmatprep.subr.mxu0 %v207
    %360 = vmatpush1.msra.mxu0 %v206
    %361 = vmatprep.subr.mxu0 %v209
    %362 = vmatpush1.msra.mxu0 %v208
    %363 = vmatprep.subr.mxu0 %v211
    %364 = vmatpush1.msra.mxu0 %v210
    %365 = vmatprep.subr.mxu0 %v213
    %366 = vmatpush1.msra.mxu0 %v212
    %367 = vmatprep.subr.mxu0 %v215
    %368 = vmatpush1.msra.mxu0 %v214
    %369 = vmatprep.subr.mxu0 %v217
    %370 = vmatpush1.msra.mxu0 %v216
    %371 = vmatprep.subr.mxu0 %v219
    %372 = vmatpush1.msra.mxu0 %v218
    %373 = vmatprep.subr.mxu0 %v221
    %374 = vmatpush1.msra.mxu0 %v220
    %375 = vmatprep.subr.mxu0 %v223
    %376 = vmatpush1.msra.mxu0 %v222
    %377 = vmatprep.subr.mxu0 %v225
    %378 = vmatpush1.msra.mxu0 %v224
    %379 = vmatprep.subr.mxu0 %v227
    %380 = vmatpush1.msra.mxu0 %v226
    %381 = vmatprep.subr.mxu0 %v229
    %382 = vmatpush1.msra.mxu0 %v228
    %383 = vmatprep.subr.mxu0 %v231
    %384 = vmatpush1.msra.mxu0 %v230
    %385 = vmatprep.subr.mxu0 %v233
    %386 = vmatpush1.msra.mxu0 %v232
    %387 = vmatprep.subr.mxu0 %v235
    %388 = vmatpush1.msra.mxu0 %v234
    %389 = vmatprep.subr.mxu0 %v237
    %390 = vmatpush1.msra.mxu0 %v236
    %391 = vmatprep.subr.mxu0 %v239
    %392 = vmatpush1.msra.mxu0 %v238
    %393 = vmatprep.mubr.f32.mxu0 %v107
    %394 = vmatmul.mubr.f32.gmra.mrb[0].mxu0 %v106
    %v395 = vpop.f32.mrb[0].mxu0
    %v396 = vadd.f32 %v319, %v395
    %v397 = vpop.f32.mrb[0].mxu0
    %v398 = vadd.f32 %v321, %v397
    %399 = vmatprep.mubr.f32.mxu0 %v111
    %400 = vmatmul.mubr.f32.gmra.mrb[0].mxu0 %v110
    %v401 = vpop.f32.mrb[0].mxu0
    %v402 = vadd.f32 %v325, %v401
    %v403 = vpop.f32.mrb[0].mxu0
    %v404 = vadd.f32 %v327, %v403
    %405 = vdwg.mxu0
    %v406 = vmax.f32 %v396, 0.0
    %v407 = vmax.f32 %v398, 0.0
    %v408 = vmax.f32 %v402, 0.0
    %v409 = vmax.f32 %v404, 0.0
    %v410 = vld [vmem:[#allocation7] sm:$0xff]
    %v411 = vld [vmem:[#allocation7 + $0x8] sm:$0xff]
    %v412 = vld [vmem:[#allocation7 + $0x10] sm:$0xff]
    %v413 = vld [vmem:[#allocation7 + $0x18] sm:$0xff]
    %v414 = vld [vmem:[#allocation7 + $0x20] sm:$0xff]
    %v415 = vld [vmem:[#allocation7 + $0x28] sm:$0xff]
    %v416 = vld [vmem:[#allocation7 + $0x30] sm:$0xff]
    %v417 = vld [vmem:[#allocation7 + $0x38] sm:$0xff]
    %v418 = vld [vmem:[#allocation7 + $0x40] sm:$0xff]
    %v419 = vld [vmem:[#allocation7 + $0x48] sm:$0xff]
    %v420 = vld [vmem:[#allocation7 + $0x50] sm:$0xff]
    %v421 = vld [vmem:[#allocation7 + $0x58] sm:$0xff]
    %v422 = vld [vmem:[#allocation7 + $0x60] sm:$0xff]
    %v423 = vld [vmem:[#allocation7 + $0x68] sm:$0xff]
    %v424 = vld [vmem:[#allocation7 + $0x70] sm:$0xff]
    %v425 = vld [vmem:[#allocation7 + $0x78] sm:$0xff]
    %v426 = vld [vmem:[#allocation7 + $0x80] sm:$0xff]
    %v427 = vld [vmem:[#allocation7 + $0x88] sm:$0xff]
    %v428 = vld [vmem:[#allocation7 + $0x90] sm:$0xff]
    %v429 = vld [vmem:[#allocation7 + $0x98] sm:$0xff]
    %v430 = vld [vmem:[#allocation7 + $0xa0] sm:$0xff]
    %v431 = vld [vmem:[#allocation7 + $0xa8] sm:$0xff]
    %v432 = vld [vmem:[#allocation7 + $0xb0] sm:$0xff]
    %v433 = vld [vmem:[#allocation7 + $0xb8] sm:$0xff]
    %v434 = vld [vmem:[#allocation7 + $0xc0] sm:$0xff]
    %v435 = vld [vmem:[#allocation7 + $0xc8] sm:$0xff]
    %v436 = vld [vmem:[#allocation7 + $0xd0] sm:$0xff]
    %v437 = vld [vmem:[#allocation7 + $0xd8] sm:$0xff]
    %v438 = vld [vmem:[#allocation7 + $0xe0] sm:$0xff]
    %v439 = vld [vmem:[#allocation7 + $0xe8] sm:$0xff]
    %v440 = vld [vmem:[#allocation7 + $0xf0] sm:$0xff]
    %v441 = vld [vmem:[#allocation7 + $0xf8] sm:$0xff]
    %v442 = vld [vmem:[%s4] sm:$0x1]
    %v444 = vlaneseq
    %v445 = vshrl.u32 %v444, 7
    %v446 = vsub.s32 0, %v445
    %v447 = vrot.slane %v442, %v446
    %449 = vmatprep.subr.mxu0 0.0
    %450 = vmatpush1.msra.mxu0 %v410
    %451 = vmatprep.subr.mxu0 0.0
    %452 = vmatpush1.msra.mxu0 %v411
    %453 = vmatprep.subr.mxu0 0.0
    %454 = vmatpush1.msra.mxu0 %v412
    %455 = vmatprep.subr.mxu0 0.0
    %456 = vmatpush1.msra.mxu0 %v413
    %457 = vmatprep.subr.mxu0 0.0
    %458 = vmatpush1.msra.mxu0 %v414
    %459 = vmatprep.subr.mxu0 0.0
    %460 = vmatpush1.msra.mxu0 %v415
    %461 = vmatprep.subr.mxu0 0.0
    %462 = vmatpush1.msra.mxu0 %v416
    %463 = vmatprep.subr.mxu0 0.0
    %464 = vmatpush1.msra.mxu0 %v417
    %465 = vmatprep.subr.mxu0 0.0
    %466 = vmatpush1.msra.mxu0 %v418
    %467 = vmatprep.subr.mxu0 0.0
    %468 = vmatpush1.msra.mxu0 %v419
    %469 = vmatprep.subr.mxu0 0.0
    %470 = vmatpush1.msra.mxu0 %v420
    %471 = vmatprep.subr.mxu0 0.0
    %472 = vmatpush1.msra.mxu0 %v421
    %473 = vmatprep.subr.mxu0 0.0
    %474 = vmatpush1.msra.mxu0 %v422
    %475 = vmatprep.subr.mxu0 0.0
    %476 = vmatpush1.msra.mxu0 %v423
    %477 = vmatprep.subr.mxu0 0.0
    %478 = vmatpush1.msra.mxu0 %v424
    %479 = vmatprep.subr.mxu0 0.0
    %480 = vmatpush1.msra.mxu0 %v425
    %481 = vmatprep.subr.mxu0 0.0
    %482 = vmatpush1.msra.mxu0 %v426
    %483 = vmatprep.subr.mxu0 0.0
    %484 = vmatpush1.msra.mxu0 %v427
    %485 = vmatprep.subr.mxu0 0.0
    %486 = vmatpush1.msra.mxu0 %v428
    %487 = vmatprep.subr.mxu0 0.0
    %488 = vmatpush1.msra.mxu0 %v429
    %489 = vmatprep.subr.mxu0 0.0
    %490 = vmatpush1.msra.mxu0 %v430
    %491 = vmatprep.subr.mxu0 0.0
    %492 = vmatpush1.msra.mxu0 %v431
    %493 = vmatprep.subr.mxu0 0.0
    %494 = vmatpush1.msra.mxu0 %v432
    %495 = vmatprep.subr.mxu0 0.0
    %496 = vmatpush1.msra.mxu0 %v433
    %497 = vmatprep.subr.mxu0 0.0
    %498 = vmatpush1.msra.mxu0 %v434
    %499 = vmatprep.subr.mxu0 0.0
    %500 = vmatpush1.msra.mxu0 %v435
    %501 = vmatprep.subr.mxu0 0.0
    %502 = vmatpush1.msra.mxu0 %v436
    %503 = vmatprep.subr.mxu0 0.0
    %504 = vmatpush1.msra.mxu0 %v437
    %505 = vmatprep.subr.mxu0 0.0
    %506 = vmatpush1.msra.mxu0 %v438
    %507 = vmatprep.subr.mxu0 0.0
    %508 = vmatpush1.msra.mxu0 %v439
    %509 = vmatprep.subr.mxu0 0.0
    %510 = vmatpush1.msra.mxu0 %v440
    %511 = vmatprep.subr.mxu0 0.0
    %512 = vmatpush1.msra.mxu0 %v441
    %513 = vmatprep.mubr.f32.mxu0 %v407
    %514 = vmatmul.mubr.f32.gmra.mrb[0].mxu0 %v406
    %v515 = vpop.f32.mrb[0].mxu0
    %v516 = vadd.f32 %v447, %v515
    %v517 = vpop.f32.mrb[0].mxu0
    %518 = vmatprep.mubr.f32.mxu0 %v409
    %519 = vmatmul.mubr.f32.gmra.mrb[0].mxu0 %v408
    %v520 = vpop.f32.mrb[0].mxu0
    %v521 = vadd.f32 %v447, %v520
    %v522 = vpop.f32.mrb[0].mxu0
    %523 = vdwg.mxu0
    %v524 = vmax.f32 %v516, 0.0
    %v525 = vmax.f32 %v521, 0.0
    %v526 = vld [vmem:[#allocation8] sm:$0xff]
    %v527 = vld [vmem:[#allocation8 + $0x8] sm:$0xff]
    %v528 = vld [vmem:[#allocation8 + $0x10] sm:$0xff]
    %v529 = vld [vmem:[#allocation8 + $0x18] sm:$0xff]
    %v530 = vld [vmem:[#allocation8 + $0x20] sm:$0xff]
    %v531 = vld [vmem:[#allocation8 + $0x28] sm:$0xff]
    %v532 = vld [vmem:[#allocation8 + $0x30] sm:$0xff]
    %v533 = vld [vmem:[#allocation8 + $0x38] sm:$0xff]
    %v534 = vld [vmem:[#allocation8 + $0x40] sm:$0xff]
    %v535 = vld [vmem:[#allocation8 + $0x48] sm:$0xff]
    %v536 = vld [vmem:[#allocation8 + $0x50] sm:$0xff]
    %v537 = vld [vmem:[#allocation8 + $0x58] sm:$0xff]
    %v538 = vld [vmem:[#allocation8 + $0x60] sm:$0xff]
    %v539 = vld [vmem:[#allocation8 + $0x68] sm:$0xff]
    %v540 = vld [vmem:[#allocation8 + $0x70] sm:$0xff]
    %v541 = vld [vmem:[#allocation8 + $0x78] sm:$0xff]
    %v542 = vld [vmem:[%s6] sm:$0x1]
    %v544 = vlaneseq
    %v545 = vshrl.u32 %v544, 7
    %v546 = vsub.s32 0, %v545
    %v547 = vrot.slane %v542, %v546
    %549 = vmatprep.subr.mxu0 0.0
    %550 = vmatpush1.msra.mxu0 %v526
    %551 = vmatprep.subr.mxu0 0.0
    %552 = vmatpush1.msra.mxu0 %v527
    %553 = vmatprep.subr.mxu0 0.0
    %554 = vmatpush1.msra.mxu0 %v528
    %555 = vmatprep.subr.mxu0 0.0
    %556 = vmatpush1.msra.mxu0 %v529
    %557 = vmatprep.subr.mxu0 0.0
    %558 = vmatpush1.msra.mxu0 %v530
    %559 = vmatprep.subr.mxu0 0.0
    %560 = vmatpush1.msra.mxu0 %v531
    %561 = vmatprep.subr.mxu0 0.0
    %562 = vmatpush1.msra.mxu0 %v532
    %563 = vmatprep.subr.mxu0 0.0
    %564 = vmatpush1.msra.mxu0 %v533
    %565 = vmatprep.subr.mxu0 0.0
    %566 = vmatpush1.msra.mxu0 %v534
    %567 = vmatprep.subr.mxu0 0.0
    %568 = vmatpush1.msra.mxu0 %v535
    %569 = vmatprep.subr.mxu0 0.0
    %570 = vmatpush1.msra.mxu0 %v536
    %571 = vmatprep.subr.mxu0 0.0
    %572 = vmatpush1.msra.mxu0 %v537
    %573 = vmatprep.subr.mxu0 0.0
    %574 = vmatpush1.msra.mxu0 %v538
    %575 = vmatprep.subr.mxu0 0.0
    %576 = vmatpush1.msra.mxu0 %v539
    %577 = vmatprep.subr.mxu0 0.0
    %578 = vmatpush1.msra.mxu0 %v540
    %579 = vmatprep.subr.mxu0 0.0
    %580 = vmatpush1.msra.mxu0 %v541
    %581 = vmatprep.subr.mxu0 0.0
    %582 = vmatpush1.msra.mxu0 0.0
    %583 = vmatprep.subr.mxu0 0.0
    %584 = vmatpush1.msra.mxu0 0.0
    %585 = vmatprep.subr.mxu0 0.0
    %586 = vmatpush1.msra.mxu0 0.0
    %587 = vmatprep.subr.mxu0 0.0
    %588 = vmatpush1.msra.mxu0 0.0
    %589 = vmatprep.subr.mxu0 0.0
    %590 = vmatpush1.msra.mxu0 0.0
    %591 = vmatprep.subr.mxu0 0.0
    %592 = vmatpush1.msra.mxu0 0.0
    %593 = vmatprep.subr.mxu0 0.0
    %594 = vmatpush1.msra.mxu0 0.0
    %595 = vmatprep.subr.mxu0 0.0
    %596 = vmatpush1.msra.mxu0 0.0
    %597 = vmatprep.subr.mxu0 0.0
    %598 = vmatpush1.msra.mxu0 0.0
    %599 = vmatprep.subr.mxu0 0.0
    %600 = vmatpush1.msra.mxu0 0.0
    %601 = vmatprep.subr.mxu0 0.0
    %602 = vmatpush1.msra.mxu0 0.0
    %603 = vmatprep.subr.mxu0 0.0
    %604 = vmatpush1.msra.mxu0 0.0
    %605 = vmatprep.subr.mxu0 0.0
    %606 = vmatpush1.msra.mxu0 0.0
    %607 = vmatprep.subr.mxu0 0.0
    %608 = vmatpush1.msra.mxu0 0.0
    %609 = vmatprep.subr.mxu0 0.0
    %610 = vmatpush1.msra.mxu0 0.0
    %611 = vmatprep.subr.mxu0 0.0
    %612 = vmatpush1.msra.mxu0 0.0
    %613 = vmatprep.mubr.f32.mxu0 0.0
    %614 = vmatmul.mubr.f32.gmra.mrb[0].mxu0 %v524
    %v615 = vpop.f32.mrb[0].mxu0
    %v616 = vadd.f32 %v547, %v615
    %v617 = vpop.f32.mrb[0].mxu0
    %618 = vmatprep.mubr.f32.mxu0 0.0
    %619 = vmatmul.mubr.f32.gmra.mrb[0].mxu0 %v525
    %v620 = vpop.f32.mrb[0].mxu0
    %v621 = vadd.f32 %v547, %v620
    %v622 = vpop.f32.mrb[0].mxu0
    %623 = vdwg.mxu0
    %624 = vst [vmem:[#allocation11] sm:$0xff] %v616
    %625 = vst [vmem:[#allocation11 + $0x8] sm:$0xff] %v621
    %v626 = vld [vmem:[#allocation10] sm:$0xff]
    %v627 = vld [vmem:[#allocation10 + $0x8] sm:$0xff]
    %v628 = vld [vmem:[#allocation10 + $0x10] sm:$0xff]
    %v629 = vld [vmem:[#allocation10 + $0x18] sm:$0xff]
    %v630 = vld [vmem:[#allocation10 + $0x20] sm:$0xff]
    %v631 = vld [vmem:[#allocation10 + $0x28] sm:$0xff]
    %v632 = vld [vmem:[#allocation10 + $0x30] sm:$0xff]
    %v633 = vld [vmem:[#allocation10 + $0x38] sm:$0xff]
    %v634 = vld [vmem:[#allocation10 + $0x40] sm:$0xff]
    %v635 = vld [vmem:[#allocation10 + $0x48] sm:$0xff]
    %v636 = vld [vmem:[#allocation10 + $0x50] sm:$0xff]
    %v637 = vld [vmem:[#allocation10 + $0x58] sm:$0xff]
    %v638 = vld [vmem:[#allocation10 + $0x60] sm:$0xff]
    %v639 = vld [vmem:[#allocation10 + $0x68] sm:$0xff]
    %v640 = vld [vmem:[#allocation10 + $0x70] sm:$0xff]
    %v641 = vld [vmem:[#allocation10 + $0x78] sm:$0xff]
    %v642 = vld [vmem:[%s8] sm:$0x1]
    %v644 = vlaneseq
    %v645 = vshrl.u32 %v644, 7
    %v646 = vsub.s32 0, %v645
    %v647 = vrot.slane %v642, %v646
    %649 = vmatprep.subr.mxu0 0.0
    %650 = vmatpush1.msra.mxu0 %v626
    %651 = vmatprep.subr.mxu0 0.0
    %652 = vmatpush1.msra.mxu0 %v627
    %653 = vmatprep.subr.mxu0 0.0
    %654 = vmatpush1.msra.mxu0 %v628
    %655 = vmatprep.subr.mxu0 0.0
    %656 = vmatpush1.msra.mxu0 %v629
    %657 = vmatprep.subr.mxu0 0.0
    %658 = vmatpush1.msra.mxu0 %v630
    %659 = vmatprep.subr.mxu0 0.0
    %660 = vmatpush1.msra.mxu0 %v631
    %661 = vmatprep.subr.mxu0 0.0
    %662 = vmatpush1.msra.mxu0 %v632
    %663 = vmatprep.subr.mxu0 0.0
    %664 = vmatpush1.msra.mxu0 %v633
    %665 = vmatprep.subr.mxu0 0.0
    %666 = vmatpush1.msra.mxu0 %v634
    %667 = vmatprep.subr.mxu0 0.0
    %668 = vmatpush1.msra.mxu0 %v635
    %669 = vmatprep.subr.mxu0 0.0
    %670 = vmatpush1.msra.mxu0 %v636
    %671 = vmatprep.subr.mxu0 0.0
    %672 = vmatpush1.msra.mxu0 %v637
    %673 = vmatprep.subr.mxu0 0.0
    %674 = vmatpush1.msra.mxu0 %v638
    %675 = vmatprep.subr.mxu0 0.0
    %676 = vmatpush1.msra.mxu0 %v639
    %677 = vmatprep.subr.mxu0 0.0
    %678 = vmatpush1.msra.mxu0 %v640
    %679 = vmatprep.subr.mxu0 0.0
    %680 = vmatpush1.msra.mxu0 %v641
    %681 = vmatprep.subr.mxu0 0.0
    %682 = vmatpush1.msra.mxu0 0.0
    %683 = vmatprep.subr.mxu0 0.0
    %684 = vmatpush1.msra.mxu0 0.0
    %685 = vmatprep.subr.mxu0 0.0
    %686 = vmatpush1.msra.mxu0 0.0
    %687 = vmatprep.subr.mxu0 0.0
    %688 = vmatpush1.msra.mxu0 0.0
    %689 = vmatprep.subr.mxu0 0.0
    %690 = vmatpush1.msra.mxu0 0.0
    %691 = vmatprep.subr.mxu0 0.0
    %692 = vmatpush1.msra.mxu0 0.0
    %693 = vmatprep.subr.mxu0 0.0
    %694 = vmatpush1.msra.mxu0 0.0
    %695 = vmatprep.subr.mxu0 0.0
    %696 = vmatpush1.msra.mxu0 0.0
    %697 = vmatprep.subr.mxu0 0.0
    %698 = vmatpush1.msra.mxu0 0.0
    %699 = vmatprep.subr.mxu0 0.0
    %700 = vmatpush1.msra.mxu0 0.0
    %701 = vmatprep.subr.mxu0 0.0
    %702 = vmatpush1.msra.mxu0 0.0
    %703 = vmatprep.subr.mxu0 0.0
    %704 = vmatpush1.msra.mxu0 0.0
    %705 = vmatprep.subr.mxu0 0.0
    %706 = vmatpush1.msra.mxu0 0.0
    %707 = vmatprep.subr.mxu0 0.0
    %708 = vmatpush1.msra.mxu0 0.0
    %709 = vmatprep.subr.mxu0 0.0
    %710 = vmatpush1.msra.mxu0 0.0
    %711 = vmatprep.subr.mxu0 0.0
    %712 = vmatpush1.msra.mxu0 0.0
    %713 = vmatprep.mubr.f32.mxu0 0.0
    %714 = vmatmul.mubr.f32.gmra.mrb[0].mxu0 %v524
    %v715 = vpop.f32.mrb[0].mxu0
    %v716 = vadd.f32 %v647, %v715
    %v717 = vpop.f32.mrb[0].mxu0
    %718 = vmatprep.mubr.f32.mxu0 0.0
    %719 = vmatmul.mubr.f32.gmra.mrb[0].mxu0 %v525
    %v720 = vpop.f32.mrb[0].mxu0
    %v721 = vadd.f32 %v647, %v720
    %v722 = vpop.f32.mrb[0].mxu0
    %723 = vdwg.mxu0
    %724 = vst [vmem:[#allocation12] sm:$0xff] %v716
    %725 = vst [vmem:[#allocation12 + $0x8] sm:$0xff] %v721
    // Predicated region
    $region58: #{tpu_custom_call.1} parent=1 // pred_check
      _
    $region59: #{tpu_custom_call.1} parent=1 // pred_check_branch
      %727 = sbr.rel (0) target = $region61
    $region60: #{tpu_custom_call.1} parent=1 // pred_region
      %s729 = ssub.s32 256, 256
      %730 = vsyncadd [#allocation4], %s729
      %s731 = sshll.u32 [#allocation11], 4
      %s732 = int_to_ptr.vmem [resolvable:$true] %s731
      %737 = dma.vmem_to_hbm [thread:$0]  %s732, 256, %s9, [#allocation4], 128, 128, 8
    $region61: #{tpu_custom_call.1} parent=1 // pred_fallthru
      _
    // Predicated region
    $region62: #{tpu_custom_call.1} parent=1 // pred_check
      _
    $region63: #{tpu_custom_call.1} parent=1 // pred_check_branch
      %739 = sbr.rel (0) target = $region65
    $region64: #{tpu_custom_call.1} parent=1 // pred_region
      %s741 = ssub.s32 256, 256
      %742 = vsyncadd [#allocation13], %s741
      %s743 = sshll.u32 [#allocation12], 4
      %s744 = int_to_ptr.vmem [resolvable:$true] %s743
      %749 = dma.vmem_to_hbm [thread:$0]  %s744, 256, %s10, [#allocation13], 128, 128, 8
    $region65: #{tpu_custom_call.1} parent=1 // pred_fallthru
      _
    // Predicated region
    $region66: #{tpu_custom_call.1} parent=1 // pred_check
      _
    $region67: #{tpu_custom_call.1} parent=1 // pred_check_branch
      %751 = sbr.rel (0) target = $region69
    $region68: #{tpu_custom_call.1} parent=1 // pred_region
      %752 = dma.done [#allocation4], 256
    $region69: #{tpu_custom_call.1} parent=1 // pred_fallthru
      _
    // Predicated region
    $region70: #{tpu_custom_call.1} parent=1 // pred_check
      _
    $region71: #{tpu_custom_call.1} parent=1 // pred_check_branch
      %754 = sbr.rel (0) target = $region73
    $region72: #{tpu_custom_call.1} parent=1 // pred_region
      %755 = dma.done [#allocation13], 256
    $region73: #{tpu_custom_call.1} parent=1 // pred_fallthru
      _
    %756 = vsyncpa [#allocation3], 1
    %757 = vsyncpa [#allocation6], 1
    %758 = vsyncpa [#allocation9], 1
    %759 = vsyncpa [#allocation4], 1
    %760 = vsyncpa [#allocation13], 1

</llo_original>
